<compile_context>
chip_gen: v7x
topology: tpu7x:2x2x1
jax: 0.10.0
libtpu: 0.0.40
codegen_flags: <defaults>
</compile_context>

<pallas_src>
import math
import jax
import jax.numpy as jnp
from jax.experimental import pallas as pl
from jax.experimental.pallas import tpu as pltpu

# ---- model hyper-parameters (small, consistent with the module) ----
B = 2            # batch
S = 8            # sequence length
D_MODEL = 32     # d_model
NHEAD = 4        # number of attention heads
HEAD_DIM = D_MODEL // NHEAD
DIM_FF = 64      # dim_feedforward
EPS = 1e-5       # nn.LayerNorm default eps
BS = B * S       # total rows processed in one kernel invocation

# ---- packed bf16 weight-slab row offsets (lanes zero-padded to 128) ----
W_QKV_ROW = 0                       # (D, 3D) fused q|k|v
W_O_ROW = D_MODEL                   # (D, D)
W_1_ROW = 2 * D_MODEL               # (D, FF)
W_2_ROW = 3 * D_MODEL               # (FF, D)
WSLAB_ROWS = 3 * D_MODEL + DIM_FF   # 160

# ---- packed f32 aux-tile row offsets (lanes zero-padded to 128) ----
AUX_VEC_ROWS = 8                              # biases + LN params
AUX_BMASK_ROW = AUX_VEC_ROWS                  # (NHEAD*BS, BS) additive batch mask
AUX_HMASK_ROW = AUX_BMASK_ROW + NHEAD * BS    # (NHEAD*BS, D) multiplicative head mask
AUX_ROWS = AUX_HMASK_ROW + NHEAD * BS         # 136


def encoder_layer_kernel(
    x_ref,        # (BS, D)             f32
    wslab_ref,    # (WSLAB_ROWS, 128)   bf16 packed weights (pre-transposed)
    aux_ref,      # (AUX_ROWS, 128)     f32 packed biases / LN params / masks
    o_ref,        # (BS, D)             f32
):
    x = x_ref[...]                                           # (BS, D) f32

    # ---- unpack small vectors (all slices start at lane 0) ----
    b_qkv = aux_ref[0:1, 0:3 * D_MODEL]                      # (1, 3D)
    b_o   = aux_ref[1:2, 0:D_MODEL]
    b_1   = aux_ref[2:3, 0:DIM_FF]
    b_2   = aux_ref[3:4, 0:D_MODEL]
    g1    = aux_ref[4:5, 0:D_MODEL]
    be1   = aux_ref[5:6, 0:D_MODEL]
    g2    = aux_ref[6:7, 0:D_MODEL]
    be2   = aux_ref[7:8, 0:D_MODEL]
    batch_mask = aux_ref[AUX_BMASK_ROW:AUX_BMASK_ROW + NHEAD * BS, 0:BS]       # (64, 16)
    head_mask  = aux_ref[AUX_HMASK_ROW:AUX_HMASK_ROW + NHEAD * BS, 0:D_MODEL]  # (64, 32)

    # ---- static slices of the packed weight slab ----
    wqkv = wslab_ref[W_QKV_ROW:W_QKV_ROW + D_MODEL, 0:3 * D_MODEL]   # (D, 3D)  bf16
    wo   = wslab_ref[W_O_ROW:W_O_ROW + D_MODEL, 0:D_MODEL]           # (D, D)
    w1   = wslab_ref[W_1_ROW:W_1_ROW + D_MODEL, 0:DIM_FF]            # (D, FF)
    w2   = wslab_ref[W_2_ROW:W_2_ROW + DIM_FF, 0:D_MODEL]            # (FF, D)

    # ---- fused Q/K/V projection (one MXU matmul), f32 accumulate ----
    qkv = jnp.dot(x.astype(jnp.bfloat16), wqkv,
                  preferred_element_type=jnp.float32) + b_qkv        # (BS, 3D) f32
    q = qkv[:, 0:D_MODEL]
    k = qkv[:, D_MODEL:2 * D_MODEL]
    v = qkv[:, 2 * D_MODEL:3 * D_MODEL]

    # ---- head-batched attention: Q tiled 4x along sublanes, lane-masked per head ----
    # row block h of q_blk holds Q with only head-h's lanes kept, so one dot_general
    # against K (contracting feature lanes) yields every head's scores at once.
    q_blk = jnp.concatenate([q] * NHEAD, axis=0) * head_mask          # (64, D) f32
    dn = (((1,), (1,)), ((), ()))                                     # contract last axes
    scale = jnp.float32(1.0 / math.sqrt(HEAD_DIM))
    s = jax.lax.dot_general(q_blk.astype(jnp.bfloat16), k.astype(jnp.bfloat16), dn,
                            preferred_element_type=jnp.float32)       # (64, BS)
    s = s * scale + batch_mask                                        # batch block-diag mask
    s = s - jnp.max(s, axis=-1, keepdims=True)
    p = jnp.exp(s)
    p = p * pl.reciprocal(jnp.sum(p, axis=-1, keepdims=True), approx=True)

    pv = jnp.dot(p.astype(jnp.bfloat16), v.astype(jnp.bfloat16),
                 preferred_element_type=jnp.float32)                  # (64, D)
    pv = pv * head_mask                                               # keep own-head lanes
    attn = (pv[0:BS] + pv[BS:2 * BS]
            + pv[2 * BS:3 * BS] + pv[3 * BS:4 * BS])                  # (BS, D) concat heads

    # ---- single attention out-projection ----
    src2 = jnp.dot(attn.astype(jnp.bfloat16), wo,
                   preferred_element_type=jnp.float32) + b_o          # (BS, D)

    # ---- residual + LayerNorm1 (dropout1 == identity) ----
    src = x + src2
    mu = jnp.mean(src, axis=-1, keepdims=True)
    var = jnp.mean((src - mu) ** 2, axis=-1, keepdims=True)
    src = (src - mu) * jax.lax.rsqrt(var + EPS) * g1 + be1

    # ---- feed-forward: linear2(relu(linear1(src))) (dropout == identity) ----
    h1 = jnp.dot(src.astype(jnp.bfloat16), w1,
                 preferred_element_type=jnp.float32) + b_1
    h1 = jnp.maximum(h1, 0.0)
    ff = jnp.dot(h1.astype(jnp.bfloat16), w2,
                 preferred_element_type=jnp.float32) + b_2

    # ---- residual + LayerNorm2 (dropout2 == identity) ----
    src = src + ff
    mu = jnp.mean(src, axis=-1, keepdims=True)
    var = jnp.mean((src - mu) ** 2, axis=-1, keepdims=True)
    o_ref[...] = (src - mu) * jax.lax.rsqrt(var + EPS) * g2 + be2


def encoder_layer(x, p):
    """x: (B, S, D) float32. p: dict of pre-transposed weights / biases / LN params."""
    # ---- wrapper-side packing (XLA-side, once per call; not in the kernel) ----
    wslab = jnp.zeros((WSLAB_ROWS, 128), jnp.bfloat16)
    wqkv = jnp.concatenate([p["wq_t"], p["wk_t"], p["wv_t"]], axis=1)       # (D, 3D)
    wslab = wslab.at[W_QKV_ROW:W_QKV_ROW + D_MODEL, 0:3 * D_MODEL].set(
        wqkv.astype(jnp.bfloat16))
    wslab = wslab.at[W_O_ROW:W_O_ROW + D_MODEL, 0:D_MODEL].set(
        p["wo_t"].astype(jnp.bfloat16))
    wslab = wslab.at[W_1_ROW:W_1_ROW + D_MODEL, 0:DIM_FF].set(
        p["w1_t"].astype(jnp.bfloat16))
    wslab = wslab.at[W_2_ROW:W_2_ROW + DIM_FF, 0:D_MODEL].set(
        p["w2_t"].astype(jnp.bfloat16))

    aux = jnp.zeros((AUX_ROWS, 128), jnp.float32)
    aux = aux.at[0, 0:3 * D_MODEL].set(
        jnp.concatenate([p["bq"][0], p["bk"][0], p["bv"][0]]))
    aux = aux.at[1, 0:D_MODEL].set(p["bo"][0])
    aux = aux.at[2, 0:DIM_FF].set(p["b1"][0])
    aux = aux.at[3, 0:D_MODEL].set(p["b2"][0])
    aux = aux.at[4, 0:D_MODEL].set(p["g1"][0])
    aux = aux.at[5, 0:D_MODEL].set(p["be1"][0])
    aux = aux.at[6, 0:D_MODEL].set(p["g2"][0])
    aux = aux.at[7, 0:D_MODEL].set(p["be2"][0])

    # batch block-diagonal additive mask, tiled NHEAD x along sublanes: (64, 16)
    row_b = jnp.arange(BS) // S
    bmask = jnp.where(row_b[:, None] == row_b[None, :],
                      jnp.float32(0.0), jnp.float32(-1e30))                 # (BS, BS)
    aux = aux.at[AUX_BMASK_ROW:AUX_BMASK_ROW + NHEAD * BS, 0:BS].set(
        jnp.tile(bmask, (NHEAD, 1)))

    # per-head lane mask for sublane-stacked heads: (64, 32)
    row_head = jnp.repeat(jnp.arange(NHEAD), BS)                            # (64,)
    col_head = jnp.arange(D_MODEL) // HEAD_DIM                              # (32,)
    hmask = (row_head[:, None] == col_head[None, :]).astype(jnp.float32)
    aux = aux.at[AUX_HMASK_ROW:AUX_HMASK_ROW + NHEAD * BS, 0:D_MODEL].set(hmask)

    x2 = x.reshape(BS, D_MODEL)

    def full_spec(shape):
        zeros = (0,) * len(shape)
        return pl.BlockSpec(shape, lambda i, zeros=zeros: zeros)

    # ---- advisory cost estimate ----
    flops = (2 * BS * D_MODEL * 3 * D_MODEL            # fused QKV
             + 2 * NHEAD * BS * D_MODEL * BS           # head-batched scores
             + 2 * NHEAD * BS * BS * D_MODEL           # head-batched probs @ V
             + 2 * BS * D_MODEL * D_MODEL              # out-projection
             + 2 * BS * D_MODEL * DIM_FF               # linear1
             + 2 * BS * DIM_FF * D_MODEL)              # linear2
    transcendentals = NHEAD * BS * BS + NHEAD * BS + 2 * BS
    bytes_accessed = (x2.size * 4 + BS * D_MODEL * 4 + aux.size * 4 + wslab.size * 2)

    out2 = pl.pallas_call(
        encoder_layer_kernel,
        out_shape=jax.ShapeDtypeStruct((BS, D_MODEL), jnp.float32),
        grid_spec=pltpu.PrefetchScalarGridSpec(
            num_scalar_prefetch=0,
            grid=(1,),                                 # single step: everything fits in VMEM
            in_specs=[
                full_spec((BS, D_MODEL)),              # x
                full_spec(wslab.shape),                # one packed weight slab (1 DMA)
                full_spec(aux.shape),                  # one packed aux tile (1 DMA)
            ],
            out_specs=pl.BlockSpec((BS, D_MODEL), lambda i: (0, 0)),
        ),
        compiler_params=pltpu.CompilerParams(
            dimension_semantics=("arbitrary",)),
        cost_estimate=pl.CostEstimate(
            flops=flops, transcendentals=transcendentals,
            bytes_accessed=bytes_accessed),
    )(x2, wslab, aux)

    return out2.reshape(B, S, D_MODEL)


def reference(x, p):
    """Pure-JAX reference of the same forward pass.

    Weights are rounded through bf16 (same quantization the kernel feeds the MXU);
    activations stay f32, so the tolerance also covers the kernel's bf16 MXU inputs.
    """
    bf = lambda w: w.astype(jnp.bfloat16).astype(jnp.float32)

    def ln(y, g, b):
        mu = jnp.mean(y, axis=-1, keepdims=True)
        var = jnp.mean((y - mu) ** 2, axis=-1, keepdims=True)
        return (y - mu) / jnp.sqrt(var + EPS) * g + b

    q = x @ bf(p["wq_t"]) + p["bq"]
    k = x @ bf(p["wk_t"]) + p["bk"]
    v = x @ bf(p["wv_t"]) + p["bv"]
    qh = q.reshape(B, S, NHEAD, HEAD_DIM).transpose(0, 2, 1, 3)
    kh = k.reshape(B, S, NHEAD, HEAD_DIM).transpose(0, 2, 1, 3)
    vh = v.reshape(B, S, NHEAD, HEAD_DIM).transpose(0, 2, 1, 3)
    s = jnp.einsum("bhqd,bhkd->bhqk", qh, kh) / math.sqrt(HEAD_DIM)
    a = jax.nn.softmax(s, axis=-1)
    o = jnp.einsum("bhqk,bhkd->bhqd", a, vh).transpose(0, 2, 1, 3).reshape(B, S, D_MODEL)
    src2 = o @ bf(p["wo_t"]) + p["bo"]
    src = ln(x + src2, p["g1"], p["be1"])
    h1 = jax.nn.relu(src @ bf(p["w1_t"]) + p["b1"])
    src2 = h1 @ bf(p["w2_t"]) + p["b2"]
    return ln(src + src2, p["g2"], p["be2"])


if __name__ == "__main__":
    key = jax.random.PRNGKey(0)
    keys = jax.random.split(key, 12)

    x = jax.random.normal(keys[0], (B, S, D_MODEL), dtype=jnp.float32)

    sc = 0.1
    params = {
        # in_proj split into q/k/v, stored transposed: (D, D)
        "wq_t": sc * jax.random.normal(keys[1], (D_MODEL, D_MODEL), jnp.float32),
        "wk_t": sc * jax.random.normal(keys[2], (D_MODEL, D_MODEL), jnp.float32),
        "wv_t": sc * jax.random.normal(keys[3], (D_MODEL, D_MODEL), jnp.float32),
        "bq": sc * jax.random.normal(keys[4], (1, D_MODEL), jnp.float32),
        "bk": sc * jax.random.normal(keys[5], (1, D_MODEL), jnp.float32),
        "bv": sc * jax.random.normal(keys[6], (1, D_MODEL), jnp.float32),
        # attention out_proj, transposed
        "wo_t": sc * jax.random.normal(keys[7], (D_MODEL, D_MODEL), jnp.float32),
        "bo": sc * jax.random.normal(keys[8], (1, D_MODEL), jnp.float32),
        # feed-forward, transposed
        "w1_t": sc * jax.random.normal(keys[9], (D_MODEL, DIM_FF), jnp.float32),
        "b1": sc * jax.random.normal(keys[10], (1, DIM_FF), jnp.float32),
        "w2_t": sc * jax.random.normal(keys[11], (DIM_FF, D_MODEL), jnp.float32),
        "b2": jnp.zeros((1, D_MODEL), jnp.float32),
        # LayerNorm affine params (PyTorch init: gamma=1, beta=0)
        "g1": jnp.ones((1, D_MODEL), jnp.float32),
        "be1": jnp.zeros((1, D_MODEL), jnp.float32),
        "g2": jnp.ones((1, D_MODEL), jnp.float32),
        "be2": jnp.zeros((1, D_MODEL), jnp.float32),
    }

    out = encoder_layer(x, params)
    out = jax.block_until_ready(out)

    ref = reference(x, params)
    assert out.shape == (B, S, D_MODEL)
    assert jnp.all(jnp.isfinite(out))
    # tolerance covers bf16 MXU inputs (incl. attention operands) + approx reciprocal
    assert jnp.allclose(out, ref, atol=5e-2, rtol=5e-2), "mismatch vs JAX reference"

    print("KERNEL_OK")
</pallas_src>

<mosaic_0001>
module attributes {stable_mosaic.version = 11 : i64} {
  func.func @encoder_layer_kernel(%arg0: i32, %arg1: memref<16x32xf32, #tpu.memory_space<vmem>>, %arg2: memref<160x128xbf16, #tpu.memory_space<vmem>>, %arg3: memref<136x128xf32, #tpu.memory_space<vmem>>, %arg4: memref<16x32xf32, #tpu.memory_space<vmem>>) attributes {dimension_semantics = [#tpu.dimension_semantics<arbitrary>], iteration_bounds = array<i64: 1>, scalar_prefetch = 0 : i64, scratch_operands = 0 : i64, tpu.core_type = #tpu.core_type<tc>, window_params = [{pipeline_mode = #tpu.pipeline_mode<synchronous>, transform_indices = @transform_0, window_bounds = array<i64: 16, 32>}, {pipeline_mode = #tpu.pipeline_mode<synchronous>, transform_indices = @transform_1, window_bounds = array<i64: 160, 128>}, {pipeline_mode = #tpu.pipeline_mode<synchronous>, transform_indices = @transform_2, window_bounds = array<i64: 136, 128>}, {pipeline_mode = #tpu.pipeline_mode<synchronous>, transform_indices = @transform_3, window_bounds = array<i64: 16, 32>}]} {
    %c0 = arith.constant 0 : index
    %c0_0 = arith.constant 0 : index
    %0 = vector.load %arg1[%c0, %c0_0] : memref<16x32xf32, #tpu.memory_space<vmem>>, vector<16x32xf32>
    %c0_1 = arith.constant 0 : index
    %c0_2 = arith.constant 0 : index
    %1 = vector.load %arg3[%c0_1, %c0_2] : memref<136x128xf32, #tpu.memory_space<vmem>>, vector<1x96xf32>
    %c1 = arith.constant 1 : index
    %c0_3 = arith.constant 0 : index
    %2 = vector.load %arg3[%c1, %c0_3] : memref<136x128xf32, #tpu.memory_space<vmem>>, vector<1x32xf32>
    %c2 = arith.constant 2 : index
    %c0_4 = arith.constant 0 : index
    %3 = vector.load %arg3[%c2, %c0_4] : memref<136x128xf32, #tpu.memory_space<vmem>>, vector<1x64xf32>
    %c3 = arith.constant 3 : index
    %c0_5 = arith.constant 0 : index
    %4 = vector.load %arg3[%c3, %c0_5] : memref<136x128xf32, #tpu.memory_space<vmem>>, vector<1x32xf32>
    %c4 = arith.constant 4 : index
    %c0_6 = arith.constant 0 : index
    %5 = vector.load %arg3[%c4, %c0_6] : memref<136x128xf32, #tpu.memory_space<vmem>>, vector<1x32xf32>
    %c5 = arith.constant 5 : index
    %c0_7 = arith.constant 0 : index
    %6 = vector.load %arg3[%c5, %c0_7] : memref<136x128xf32, #tpu.memory_space<vmem>>, vector<1x32xf32>
    %c6 = arith.constant 6 : index
    %c0_8 = arith.constant 0 : index
    %7 = vector.load %arg3[%c6, %c0_8] : memref<136x128xf32, #tpu.memory_space<vmem>>, vector<1x32xf32>
    %c7 = arith.constant 7 : index
    %c0_9 = arith.constant 0 : index
    %8 = vector.load %arg3[%c7, %c0_9] : memref<136x128xf32, #tpu.memory_space<vmem>>, vector<1x32xf32>
    %c8 = arith.constant 8 : index
    %c0_10 = arith.constant 0 : index
    %9 = vector.load %arg3[%c8, %c0_10] : memref<136x128xf32, #tpu.memory_space<vmem>>, vector<64x16xf32>
    %c72 = arith.constant 72 : index
    %c0_11 = arith.constant 0 : index
    %10 = vector.load %arg3[%c72, %c0_11] : memref<136x128xf32, #tpu.memory_space<vmem>>, vector<64x32xf32>
    %c0_12 = arith.constant 0 : index
    %c0_13 = arith.constant 0 : index
    %11 = vector.load %arg2[%c0_12, %c0_13] : memref<160x128xbf16, #tpu.memory_space<vmem>>, vector<32x96xbf16>
    %c32 = arith.constant 32 : index
    %c0_14 = arith.constant 0 : index
    %12 = vector.load %arg2[%c32, %c0_14] : memref<160x128xbf16, #tpu.memory_space<vmem>>, vector<32x32xbf16>
    %c64 = arith.constant 64 : index
    %c0_15 = arith.constant 0 : index
    %13 = vector.load %arg2[%c64, %c0_15] : memref<160x128xbf16, #tpu.memory_space<vmem>>, vector<32x64xbf16>
    %c96 = arith.constant 96 : index
    %c0_16 = arith.constant 0 : index
    %14 = vector.load %arg2[%c96, %c0_16] : memref<160x128xbf16, #tpu.memory_space<vmem>>, vector<64x32xbf16>
    %15 = arith.truncf %0 : vector<16x32xf32> to vector<16x32xbf16>
    %cst = arith.constant dense<0.000000e+00> : vector<16x96xf32>
    %16 = tpu.matmul %15, %11, %cst {dimension_numbers = #tpu.dot_dimension_numbers<[1], [0], [0], [1], [0, 0, 1, 1], [], []>} : vector<16x32xbf16>, vector<32x96xbf16>, vector<16x96xf32> -> vector<16x96xf32>
    %17 = vector.broadcast %1 : vector<1x96xf32> to vector<16x96xf32>
    %18 = arith.addf %16, %17 : vector<16x96xf32>
    %19 = vector.extract_strided_slice %18 {offsets = [0, 0], sizes = [16, 32], strides = [1, 1]} : vector<16x96xf32> to vector<16x32xf32>
    %20 = vector.extract_strided_slice %18 {offsets = [0, 32], sizes = [16, 32], strides = [1, 1]} : vector<16x96xf32> to vector<16x32xf32>
    %21 = vector.extract_strided_slice %18 {offsets = [0, 64], sizes = [16, 32], strides = [1, 1]} : vector<16x96xf32> to vector<16x32xf32>
    %22 = tpu.concatenate %19, %19, %19, %19 in 0 : vector<16x32xf32>, vector<16x32xf32>, vector<16x32xf32>, vector<16x32xf32> -> vector<64x32xf32>
    %23 = arith.mulf %22, %10 : vector<64x32xf32>
    %24 = arith.truncf %23 : vector<64x32xf32> to vector<64x32xbf16>
    %25 = arith.truncf %20 : vector<16x32xf32> to vector<16x32xbf16>
    %cst_17 = arith.constant dense<0.000000e+00> : vector<64x16xf32>
    %26 = tpu.matmul %24, %25, %cst_17 {dimension_numbers = #tpu.dot_dimension_numbers<[1], [1], [0], [0], [0, 0, 1, 0], [], []>} : vector<64x32xbf16>, vector<16x32xbf16>, vector<64x16xf32> -> vector<64x16xf32>
    %cst_18 = arith.constant 0.353553385 : f32
    %27 = vector.broadcast %cst_18 : f32 to vector<64x16xf32>
    %28 = arith.mulf %26, %27 : vector<64x16xf32>
    %29 = arith.addf %28, %9 : vector<64x16xf32>
    %cst_19 = arith.constant dense<0xFF800000> : vector<64xf32>
    %30 = vector.multi_reduction <maximumf>, %29, %cst_19 [1] : vector<64x16xf32> to vector<64xf32>
    %31 = vector.shape_cast %30 : vector<64xf32> to vector<64x1xf32>
    %32 = vector.broadcast %31 : vector<64x1xf32> to vector<64x16xf32>
    %33 = arith.subf %29, %32 : vector<64x16xf32>
    %34 = math.exp %33 : vector<64x16xf32>
    %cst_20 = arith.constant dense<0.000000e+00> : vector<64xf32>
    %35 = vector.multi_reduction <add>, %34, %cst_20 [1] : vector<64x16xf32> to vector<64xf32>
    %36 = vector.shape_cast %35 : vector<64xf32> to vector<64x1xf32>
    %37 = tpu.reciprocal %36 {approx = true} : vector<64x1xf32> -> vector<64x1xf32>
    %38 = vector.broadcast %37 : vector<64x1xf32> to vector<64x16xf32>
    %39 = arith.mulf %34, %38 : vector<64x16xf32>
    %40 = arith.truncf %39 : vector<64x16xf32> to vector<64x16xbf16>
    %41 = arith.truncf %21 : vector<16x32xf32> to vector<16x32xbf16>
    %cst_21 = arith.constant dense<0.000000e+00> : vector<64x32xf32>
    %42 = tpu.matmul %40, %41, %cst_21 {dimension_numbers = #tpu.dot_dimension_numbers<[1], [0], [0], [1], [0, 0, 1, 1], [], []>} : vector<64x16xbf16>, vector<16x32xbf16>, vector<64x32xf32> -> vector<64x32xf32>
    %43 = arith.mulf %42, %10 : vector<64x32xf32>
    %44 = vector.extract_strided_slice %43 {offsets = [0, 0], sizes = [16, 32], strides = [1, 1]} : vector<64x32xf32> to vector<16x32xf32>
    %45 = vector.extract_strided_slice %43 {offsets = [16, 0], sizes = [16, 32], strides = [1, 1]} : vector<64x32xf32> to vector<16x32xf32>
    %46 = arith.addf %44, %45 : vector<16x32xf32>
    %47 = vector.extract_strided_slice %43 {offsets = [32, 0], sizes = [16, 32], strides = [1, 1]} : vector<64x32xf32> to vector<16x32xf32>
    %48 = arith.addf %46, %47 : vector<16x32xf32>
    %49 = vector.extract_strided_slice %43 {offsets = [48, 0], sizes = [16, 32], strides = [1, 1]} : vector<64x32xf32> to vector<16x32xf32>
    %50 = arith.addf %48, %49 : vector<16x32xf32>
    %51 = arith.truncf %50 : vector<16x32xf32> to vector<16x32xbf16>
    %cst_22 = arith.constant dense<0.000000e+00> : vector<16x32xf32>
    %52 = tpu.matmul %51, %12, %cst_22 {dimension_numbers = #tpu.dot_dimension_numbers<[1], [0], [0], [1], [0, 0, 1, 1], [], []>} : vector<16x32xbf16>, vector<32x32xbf16>, vector<16x32xf32> -> vector<16x32xf32>
    %53 = vector.broadcast %2 : vector<1x32xf32> to vector<16x32xf32>
    %54 = arith.addf %52, %53 : vector<16x32xf32>
    %55 = arith.addf %0, %54 : vector<16x32xf32>
    %cst_23 = arith.constant dense<0.000000e+00> : vector<16xf32>
    %56 = vector.multi_reduction <add>, %55, %cst_23 [1] : vector<16x32xf32> to vector<16xf32>
    %57 = vector.shape_cast %56 : vector<16xf32> to vector<16x1xf32>
    %cst_24 = arith.constant 3.200000e+01 : f32
    %58 = vector.broadcast %cst_24 : f32 to vector<16x1xf32>
    %59 = arith.divf %57, %58 : vector<16x1xf32>
    %60 = vector.broadcast %59 : vector<16x1xf32> to vector<16x32xf32>
    %61 = arith.subf %55, %60 : vector<16x32xf32>
    %62 = arith.mulf %61, %61 : vector<16x32xf32>
    %cst_25 = arith.constant dense<0.000000e+00> : vector<16xf32>
    %63 = vector.multi_reduction <add>, %62, %cst_25 [1] : vector<16x32xf32> to vector<16xf32>
    %64 = vector.shape_cast %63 : vector<16xf32> to vector<16x1xf32>
    %cst_26 = arith.constant 3.200000e+01 : f32
    %65 = vector.broadcast %cst_26 : f32 to vector<16x1xf32>
    %66 = arith.divf %64, %65 : vector<16x1xf32>
    %67 = vector.broadcast %59 : vector<16x1xf32> to vector<16x32xf32>
    %68 = arith.subf %55, %67 : vector<16x32xf32>
    %cst_27 = arith.constant 9.99999974E-6 : f32
    %69 = vector.broadcast %cst_27 : f32 to vector<16x1xf32>
    %70 = arith.addf %66, %69 : vector<16x1xf32>
    %71 = math.rsqrt %70 : vector<16x1xf32>
    %72 = vector.broadcast %71 : vector<16x1xf32> to vector<16x32xf32>
    %73 = arith.mulf %68, %72 : vector<16x32xf32>
    %74 = vector.broadcast %5 : vector<1x32xf32> to vector<16x32xf32>
    %75 = arith.mulf %73, %74 : vector<16x32xf32>
    %76 = vector.broadcast %6 : vector<1x32xf32> to vector<16x32xf32>
    %77 = arith.addf %75, %76 : vector<16x32xf32>
    %78 = arith.truncf %77 : vector<16x32xf32> to vector<16x32xbf16>
    %cst_28 = arith.constant dense<0.000000e+00> : vector<16x64xf32>
    %79 = tpu.matmul %78, %13, %cst_28 {dimension_numbers = #tpu.dot_dimension_numbers<[1], [0], [0], [1], [0, 0, 1, 1], [], []>} : vector<16x32xbf16>, vector<32x64xbf16>, vector<16x64xf32> -> vector<16x64xf32>
    %80 = vector.broadcast %3 : vector<1x64xf32> to vector<16x64xf32>
    %81 = arith.addf %79, %80 : vector<16x64xf32>
    %cst_29 = arith.constant 0.000000e+00 : f32
    %82 = vector.broadcast %cst_29 : f32 to vector<16x64xf32>
    %83 = arith.maximumf %81, %82 : vector<16x64xf32>
    %84 = arith.truncf %83 : vector<16x64xf32> to vector<16x64xbf16>
    %cst_30 = arith.constant dense<0.000000e+00> : vector<16x32xf32>
    %85 = tpu.matmul %84, %14, %cst_30 {dimension_numbers = #tpu.dot_dimension_numbers<[1], [0], [0], [1], [0, 0, 1, 1], [], []>} : vector<16x64xbf16>, vector<64x32xbf16>, vector<16x32xf32> -> vector<16x32xf32>
    %86 = vector.broadcast %4 : vector<1x32xf32> to vector<16x32xf32>
    %87 = arith.addf %85, %86 : vector<16x32xf32>
    %88 = arith.addf %77, %87 : vector<16x32xf32>
    %cst_31 = arith.constant dense<0.000000e+00> : vector<16xf32>
    %89 = vector.multi_reduction <add>, %88, %cst_31 [1] : vector<16x32xf32> to vector<16xf32>
    %90 = vector.shape_cast %89 : vector<16xf32> to vector<16x1xf32>
    %cst_32 = arith.constant 3.200000e+01 : f32
    %91 = vector.broadcast %cst_32 : f32 to vector<16x1xf32>
    %92 = arith.divf %90, %91 : vector<16x1xf32>
    %93 = vector.broadcast %92 : vector<16x1xf32> to vector<16x32xf32>
    %94 = arith.subf %88, %93 : vector<16x32xf32>
    %95 = arith.mulf %94, %94 : vector<16x32xf32>
    %cst_33 = arith.constant dense<0.000000e+00> : vector<16xf32>
    %96 = vector.multi_reduction <add>, %95, %cst_33 [1] : vector<16x32xf32> to vector<16xf32>
    %97 = vector.shape_cast %96 : vector<16xf32> to vector<16x1xf32>
    %cst_34 = arith.constant 3.200000e+01 : f32
    %98 = vector.broadcast %cst_34 : f32 to vector<16x1xf32>
    %99 = arith.divf %97, %98 : vector<16x1xf32>
    %100 = vector.broadcast %92 : vector<16x1xf32> to vector<16x32xf32>
    %101 = arith.subf %88, %100 : vector<16x32xf32>
    %cst_35 = arith.constant 9.99999974E-6 : f32
    %102 = vector.broadcast %cst_35 : f32 to vector<16x1xf32>
    %103 = arith.addf %99, %102 : vector<16x1xf32>
    %104 = math.rsqrt %103 : vector<16x1xf32>
    %105 = vector.broadcast %104 : vector<16x1xf32> to vector<16x32xf32>
    %106 = arith.mulf %101, %105 : vector<16x32xf32>
    %107 = vector.broadcast %7 : vector<1x32xf32> to vector<16x32xf32>
    %108 = arith.mulf %106, %107 : vector<16x32xf32>
    %109 = vector.broadcast %8 : vector<1x32xf32> to vector<16x32xf32>
    %110 = arith.addf %108, %109 : vector<16x32xf32>
    %c0_36 = arith.constant 0 : index
    %c0_37 = arith.constant 0 : index
    %111 = vector.load %arg4[%c0_36, %c0_37] : memref<16x32xf32, #tpu.memory_space<vmem>>, vector<16x32xf32>
    tpu.vector_store %arg4[%c0_36, %c0_37], %110 {strides = array<i32>} : memref<16x32xf32, #tpu.memory_space<vmem>>, vector<16x32xf32>,
    return
  }
  func.func @transform_0(%arg0: i32) -> (i32, i32) {
    %c0_i32 = arith.constant 0 : i32
    %c0_i32_0 = arith.constant 0 : i32
    %c0_i32_1 = arith.constant 0 : i32
    return %c0_i32, %c0_i32_0 : i32, i32
  }
  func.func @transform_1(%arg0: i32) -> (i32, i32) {
    %c0_i32 = arith.constant 0 : i32
    %c0_i32_0 = arith.constant 0 : i32
    %c0_i32_1 = arith.constant 0 : i32
    return %c0_i32, %c0_i32_0 : i32, i32
  }
  func.func @transform_2(%arg0: i32) -> (i32, i32) {
    %c0_i32 = arith.constant 0 : i32
    %c0_i32_0 = arith.constant 0 : i32
    %c0_i32_1 = arith.constant 0 : i32
    return %c0_i32, %c0_i32_0 : i32, i32
  }
  func.func @transform_3(%arg0: i32) -> (i32, i32) {
    %c0_i32 = arith.constant 0 : i32
    %c0_i32_0 = arith.constant 0 : i32
    %c0_i32_1 = arith.constant 0 : i32
    return %c0_i32, %c0_i32_0 : i32, i32
  }
}

</mosaic_0001>

<llo_original>
// kernel: tpu_custom_call.1
$region0: #{tpu_custom_call.1}
  #allocation0 [shape = 'u32[]', space=smem, size = 0x4, offset = 0x4, fixed_abs, tag = 'smem constant byte address 0x4 - core index']
  #allocation1 [shape = 'u32[144,128]{1,0:T(1,128)}', space=vmem, size = 0x12000, scoped, tag = 'internal scratch']
  %s0 = inlined_call_operand.hbm [shape: f32[16,32], index: 0, kind: input, shape index: {}]
  %s1 = inlined_call_operand.hbm [shape: bf16[160,128], index: 1, kind: input, shape index: {}]
  %s2 = inlined_call_operand.hbm [shape: f32[136,128], index: 2, kind: input, shape index: {}]
  %s3 = inlined_call_operand.hbm [shape: f32[16,32], index: 3, kind: output, shape index: {}]
  %s4 = sld [smem:[#allocation0]]
  $region34: #{tpu_custom_call.1} parent=0
    _
  %s6 = ssub.s32 1, %s4
  %s7 = scalar_select 0, %s6, %s4
  $region1: #{tpu_custom_call.1} parent=0
    #allocation2 [shape = 'u8[8192]{0}', space=vmem, size = 0x2000, scoped, tag = 'input window, operand 0, single buffered']
    #allocation3 [shape = 's32[1]{0}', space=sflag, size = 0x4, scoped, tag = 'scoped memory for tpu_custom_call.1']
    #allocation4 [shape = 's32[1]{0}', space=sflag, size = 0x4, scoped, tag = 'scoped memory for tpu_custom_call.1']
    #allocation5 [shape = 'u8[40960]{0}', space=vmem, size = 0xa000, scoped, tag = 'input window, operand 1, single buffered']
    #allocation6 [shape = 's32[1]{0}', space=sflag, size = 0x4, scoped, tag = 'scoped memory for tpu_custom_call.1']
    #allocation7 [shape = 'u8[69632]{0}', space=vmem, size = 0x11000, scoped, tag = 'input window, operand 2, single buffered']
    #allocation8 [shape = 'u8[8192]{0}', space=vmem, size = 0x2000, scoped, tag = 'output window, operand 0, single buffered']
    %8 = vsyncpa [#allocation3], 0
    %9 = vsyncpa [#allocation6], 0
    %10 = vsyncpa [#allocation4], 0
    // Predicated region
    $region2: #{tpu_custom_call.1} parent=1 // pred_check
      _
    $region3: #{tpu_custom_call.1} parent=1 // pred_check_branch
      %12 = sbr.rel (0) target = $region5
    $region4: #{tpu_custom_call.1} parent=1 // pred_region
      %s14 = ssub.s32 256, 256
      %15 = vsyncadd [#allocation3], %s14
      %s16 = sshll.u32 [#allocation2], 4
      %s17 = int_to_ptr.vmem [resolvable:$true] %s16
      %22 = dma.hbm_to_vmem [thread:$0]  %s0, 256, %s17, [#allocation3], 128, 128, 8
    $region5: #{tpu_custom_call.1} parent=1 // pred_fallthru
      _
    // Predicated region
    $region6: #{tpu_custom_call.1} parent=1 // pred_check
      _
    $region7: #{tpu_custom_call.1} parent=1 // pred_check_branch
      %24 = sbr.rel (0) target = $region9
    $region8: #{tpu_custom_call.1} parent=1 // pred_region
      %s26 = ssub.s32 1280, 1280
      %27 = vsyncadd [#allocation6], %s26
      %s28 = sshll.u32 [#allocation5], 4
      %s29 = int_to_ptr.vmem [resolvable:$true] %s28
      %34 = dma.hbm_to_vmem [thread:$0]  %s1, 1280, %s29, [#allocation6], 64, 64, 4
    $region9: #{tpu_custom_call.1} parent=1 // pred_fallthru
      _
    // Predicated region
    $region10: #{tpu_custom_call.1} parent=1 // pred_check
      _
    $region11: #{tpu_custom_call.1} parent=1 // pred_check_branch
      %36 = sbr.rel (0) target = $region13
    $region12: #{tpu_custom_call.1} parent=1 // pred_region
      %s38 = ssub.s32 2176, 2176
      %39 = vsyncadd [#allocation6], %s38
      %s40 = sshll.u32 [#allocation7], 4
      %s41 = int_to_ptr.vmem [resolvable:$true] %s40
      %46 = dma.hbm_to_vmem [thread:$0]  %s2, 2176, %s41, [#allocation6], 128, 128, 8
    $region13: #{tpu_custom_call.1} parent=1 // pred_fallthru
      _
    // Predicated region
    $region14: #{tpu_custom_call.1} parent=1 // pred_check
      _
    $region15: #{tpu_custom_call.1} parent=1 // pred_check_branch
      %48 = sbr.rel (0) target = $region17
    $region16: #{tpu_custom_call.1} parent=1 // pred_region
      %49 = dma.done [#allocation3], 256
    $region17: #{tpu_custom_call.1} parent=1 // pred_fallthru
      _
    // Predicated region
    $region18: #{tpu_custom_call.1} parent=1 // pred_check
      _
    $region19: #{tpu_custom_call.1} parent=1 // pred_check_branch
      %51 = sbr.rel (0) target = $region21
    $region20: #{tpu_custom_call.1} parent=1 // pred_region
      %52 = dma.done [#allocation6], 1280
    $region21: #{tpu_custom_call.1} parent=1 // pred_fallthru
      _
    // Predicated region
    $region22: #{tpu_custom_call.1} parent=1 // pred_check
      _
    $region23: #{tpu_custom_call.1} parent=1 // pred_check_branch
      %54 = sbr.rel (0) target = $region25
    $region24: #{tpu_custom_call.1} parent=1 // pred_region
      %55 = dma.done [#allocation6], 2176
    $region25: #{tpu_custom_call.1} parent=1 // pred_fallthru
      _
    %v57 = vld [vmem:[#allocation2] sm:$0xff]
    %v58 = vld [vmem:[#allocation2 + $0x8] sm:$0xff]
    %v59 = vld [vmem:[#allocation7] sm:$0x1]
    %v60 = vld [vmem:[#allocation7 + $0x1] sm:$0x1]
    %v61 = vld [vmem:[#allocation7 + $0x2] sm:$0x1]
    %v62 = vld [vmem:[#allocation7 + $0x3] sm:$0x1]
    %v63 = vld [vmem:[#allocation7 + $0x4] sm:$0x1]
    %v64 = vld [vmem:[#allocation7 + $0x5] sm:$0x1]
    %v65 = vld [vmem:[#allocation7 + $0x6] sm:$0x1]
    %v66 = vld [vmem:[#allocation7 + $0x7] sm:$0x1]
    %v67 = vld [vmem:[#allocation7 + $0x8] sm:$0xff]
    %v68 = vld [vmem:[#allocation7 + $0x10] sm:$0xff]
    %v69 = vld [vmem:[#allocation7 + $0x18] sm:$0xff]
    %v70 = vld [vmem:[#allocation7 + $0x20] sm:$0xff]
    %v71 = vld [vmem:[#allocation7 + $0x28] sm:$0xff]
    %v72 = vld [vmem:[#allocation7 + $0x30] sm:$0xff]
    %v73 = vld [vmem:[#allocation7 + $0x38] sm:$0xff]
    %v74 = vld [vmem:[#allocation7 + $0x40] sm:$0xff]
    %v75 = vld [vmem:[#allocation7 + $0x48] sm:$0xff]
    %v76 = vld [vmem:[#allocation7 + $0x50] sm:$0xff]
    %v77 = vld [vmem:[#allocation7 + $0x58] sm:$0xff]
    %v78 = vld [vmem:[#allocation7 + $0x60] sm:$0xff]
    %v79 = vld [vmem:[#allocation7 + $0x68] sm:$0xff]
    %v80 = vld [vmem:[#allocation7 + $0x70] sm:$0xff]
    %v81 = vld [vmem:[#allocation7 + $0x78] sm:$0xff]
    %v82 = vld [vmem:[#allocation7 + $0x80] sm:$0xff]
    %v83 = vld [vmem:[#allocation5] sm:$0xf]
    %v84 = vld [vmem:[#allocation5 + $0x4] sm:$0xf]
    %v85 = vld [vmem:[#allocation5 + $0x8] sm:$0xf]
    %v86 = vld [vmem:[#allocation5 + $0xc] sm:$0xf]
    %v87 = vld [vmem:[#allocation5 + $0x10] sm:$0xf]
    %v88 = vld [vmem:[#allocation5 + $0x14] sm:$0xf]
    %v89 = vld [vmem:[#allocation5 + $0x18] sm:$0xf]
    %v90 = vld [vmem:[#allocation5 + $0x1c] sm:$0xf]
    %v91 = vld [vmem:[#allocation5 + $0x20] sm:$0xf]
    %v92 = vld [vmem:[#allocation5 + $0x24] sm:$0xf]
    %v93 = vld [vmem:[#allocation5 + $0x28] sm:$0xf]
    %v94 = vld [vmem:[#allocation5 + $0x2c] sm:$0xf]
    %v95 = vld [vmem:[#allocation5 + $0x30] sm:$0xf]
    %v96 = vld [vmem:[#allocation5 + $0x34] sm:$0xf]
    %v97 = vld [vmem:[#allocation5 + $0x38] sm:$0xf]
    %v98 = vld [vmem:[#allocation5 + $0x3c] sm:$0xf]
    %v99 = vld [vmem:[#allocation5 + $0x40] sm:$0xf]
    %v100 = vld [vmem:[#allocation5 + $0x44] sm:$0xf]
    %v101 = vld [vmem:[#allocation5 + $0x48] sm:$0xf]
    %v102 = vld [vmem:[#allocation5 + $0x4c] sm:$0xf]
    %v103 = vpack.c.bf16 %v58, %v57
    %v104 = vlaneseq
    %v105 = vshrl.u32 %v104, 7
    %v106 = vsub.s32 0, %v105
    %v107 = vrot.slane %v59, %v106
    %v112 = vunpack.c.l.b16 %v83
    %v113 = vunpack.c.l.b16 %v84
    %v114 = vunpack.c.l.b16 %v85
    %v115 = vunpack.c.l.b16 %v86
    %v116 = vpack.c.b16 %v113, %v112
    %v117 = vpack.c.b16 %v115, %v114
    %vm120 = vcmask 261120
    %v122 = vsel %vm120, %v103, 0
    %124 = vmatprep.subr.bf16.mxu0 0
    %125 = vmatpush1.bf16.msra.mxu0 %v116
    %126 = vmatprep.subr.bf16.mxu0 0
    %127 = vmatpush1.bf16.msra.mxu0 %v117
    %128 = vmatprep.subr.bf16.mxu0 0
    %129 = vmatpush1.bf16.msra.mxu0 0
    %130 = vmatprep.subr.bf16.mxu0 0
    %131 = vmatpush1.bf16.msra.mxu0 0
    %132 = vmatprep.subr.bf16.mxu0 0
    %133 = vmatpush1.bf16.msra.mxu0 0
    %134 = vmatprep.subr.bf16.mxu0 0
    %135 = vmatpush1.bf16.msra.mxu0 0
    %136 = vmatprep.subr.bf16.mxu0 0
    %137 = vmatpush1.bf16.msra.mxu0 0
    %138 = vmatprep.subr.bf16.mxu0 0
    %139 = vmatpush1.bf16.msra.mxu0 0
    %140 = vmatprep.subr.bf16.mxu0 0
    %141 = vmatpush1.bf16.msra.mxu0 0
    %142 = vmatprep.subr.bf16.mxu0 0
    %143 = vmatpush1.bf16.msra.mxu0 0
    %144 = vmatprep.subr.bf16.mxu0 0
    %145 = vmatpush1.bf16.msra.mxu0 0
    %146 = vmatprep.subr.bf16.mxu0 0
    %147 = vmatpush1.bf16.msra.mxu0 0
    %148 = vmatprep.subr.bf16.mxu0 0
    %149 = vmatpush1.bf16.msra.mxu0 0
    %150 = vmatprep.subr.bf16.mxu0 0
    %151 = vmatpush1.bf16.msra.mxu0 0
    %152 = vmatprep.subr.bf16.mxu0 0
    %153 = vmatpush1.bf16.msra.mxu0 0
    %154 = vmatprep.subr.bf16.mxu0 0
    %155 = vmatpush1.bf16.msra.mxu0 0
    %156 = vmatprep.mubr.bf16.mxu0 0
    %157 = vmatmul.mubr.bf16.gmra.mrb[0].mxu0 %v122
    %v158 = vpop.f32.mrb[0].mxu0
    %v159 = vadd.f32 %v107, %v158
    %v160 = vpop.f32.mrb[0].mxu0
    %v161 = vpop.f32.mrb[0].mxu0
    %v162 = vadd.f32 %v107, %v161
    %v163 = vpop.f32.mrb[0].mxu0
    %164 = vdwg.mxu0
    %v165 = vmul.f32 %v159, %v75
    %v166 = vmul.f32 %v162, %v76
    %v167 = vmul.f32 %v159, %v77
    %v168 = vmul.f32 %v162, %v78
    %v169 = vmul.f32 %v159, %v79
    %v170 = vmul.f32 %v162, %v80
    %v171 = vmul.f32 %v159, %v81
    %v172 = vmul.f32 %v162, %v82
    %v173 = vpack.c.bf16 %v166, %v165
    %v174 = vpack.c.bf16 %v168, %v167
    %v175 = vpack.c.bf16 %v170, %v169
    %v176 = vpack.c.bf16 %v172, %v171
    %v177 = vpack.c.bf16 %v162, %v159
    %179 = vrot.lane.b32.xlu0 %v177, 96
    %v180 = vpop.permute.xlu0 %179
    %v182 = vsel %vm120, %v173, 0
    %v185 = vsel %vm120, %v174, 0
    %v188 = vsel %vm120, %v175, 0
    %v191 = vsel %vm120, %v176, 0
    %v194 = vsel %vm120, %v180, 0
    %196 = vmatprep.subr.bf16.mxu0 0
    %197 = vmatpush1.bf16.xpose.msra.mxu0 %v194
    %198 = vmatprep.subr.bf16.mxu0 0
    %199 = vmatpush1.bf16.xpose.msra.mxu0 0
    %200 = vmatprep.subr.bf16.mxu0 0
    %201 = vmatpush1.bf16.xpose.msra.mxu0 0
    %202 = vmatprep.subr.bf16.mxu0 0
    %203 = vmatpush1.bf16.xpose.msra.mxu0 0
    %204 = vmatprep.subr.bf16.mxu0 0
    %205 = vmatpush1.bf16.xpose.msra.mxu0 0
    %206 = vmatprep.subr.bf16.mxu0 0
    %207 = vmatpush1.bf16.xpose.msra.mxu0 0
    %208 = vmatprep.subr.bf16.mxu0 0
    %209 = vmatpush1.bf16.xpose.msra.mxu0 0
    %210 = vmatprep.subr.bf16.mxu0 0
    %211 = vmatpush1.bf16.xpose.msra.mxu0 0
    %212 = vmatprep.subr.bf16.mxu0 0
    %213 = vmatpush1.bf16.xpose.msra.mxu0 0
    %214 = vmatprep.subr.bf16.mxu0 0
    %215 = vmatpush1.bf16.xpose.msra.mxu0 0
    %216 = vmatprep.subr.bf16.mxu0 0
    %217 = vmatpush1.bf16.xpose.msra.mxu0 0
    %218 = vmatprep.subr.bf16.mxu0 0
    %219 = vmatpush1.bf16.xpose.msra.mxu0 0
    %220 = vmatprep.subr.bf16.mxu0 0
    %221 = vmatpush1.bf16.xpose.msra.mxu0 0
    %222 = vmatprep.subr.bf16.mxu0 0
    %223 = vmatpush1.bf16.xpose.msra.mxu0 0
    %224 = vmatprep.subr.bf16.mxu0 0
    %225 = vmatpush1.bf16.xpose.msra.mxu0 0
    %226 = vmatprep.subr.bf16.mxu0 0
    %227 = vmatpush1.bf16.xpose.msra.mxu0 0
    %228 = vmatprep.mubr.bf16.mxu0 0
    %229 = vmatmul.mubr.bf16.gmra.mrb[0].mxu0 %v182
    %v230 = vpop.f32.mrb[0].mxu0
    %v231 = vadd.f32 0.0, %v230
    %v232 = vpop.f32.mrb[0].mxu0
    %v233 = vpop.f32.mrb[0].mxu0
    %v234 = vadd.f32 0.0, %v233
    %v235 = vpop.f32.mrb[0].mxu0
    %236 = vmatprep.mubr.bf16.mxu0 0
    %237 = vmatmul.mubr.bf16.gmra.mrb[0].mxu0 %v185
    %v238 = vpop.f32.mrb[0].mxu0
    %v239 = vadd.f32 0.0, %v238
    %v240 = vpop.f32.mrb[0].mxu0
    %v241 = vpop.f32.mrb[0].mxu0
    %v242 = vadd.f32 0.0, %v241
    %v243 = vpop.f32.mrb[0].mxu0
    %244 = vmatprep.mubr.bf16.mxu0 0
    %245 = vmatmul.mubr.bf16.gmra.mrb[0].mxu0 %v188
    %v246 = vpop.f32.mrb[0].mxu0
    %v247 = vadd.f32 0.0, %v246
    %v248 = vpop.f32.mrb[0].mxu0
    %v249 = vpop.f32.mrb[0].mxu0
    %v250 = vadd.f32 0.0, %v249
    %v251 = vpop.f32.mrb[0].mxu0
    %252 = vmatprep.mubr.bf16.mxu0 0
    %253 = vmatmul.mubr.bf16.gmra.mrb[0].mxu0 %v191
    %v254 = vpop.f32.mrb[0].mxu0
    %v255 = vadd.f32 0.0, %v254
    %v256 = vpop.f32.mrb[0].mxu0
    %v257 = vpop.f32.mrb[0].mxu0
    %v258 = vadd.f32 0.0, %v257
    %v259 = vpop.f32.mrb[0].mxu0
    %260 = vdwg.mxu0
    %v261 = vmul.f32 %v231, 0.35355338
    %v262 = vmul.f32 %v234, 0.35355338
    %v263 = vmul.f32 %v239, 0.35355338
    %v264 = vmul.f32 %v242, 0.35355338
    %v265 = vmul.f32 %v247, 0.35355338
    %v266 = vmul.f32 %v250, 0.35355338
    %v267 = vmul.f32 %v255, 0.35355338
    %v268 = vmul.f32 %v258, 0.35355338
    %v269 = vadd.f32 %v261, %v67
    %v270 = vadd.f32 %v262, %v68
    %v271 = vadd.f32 %v263, %v69
    %v272 = vadd.f32 %v264, %v70
    %v273 = vadd.f32 %v265, %v71
    %v274 = vadd.f32 %v266, %v72
    %v275 = vadd.f32 %v267, %v73
    %v276 = vadd.f32 %v268, %v74
    %vm277 = vcmask 130048
    %v278 = vsel %vm277, %v269, -inf
    %279 = vmax.xlane.f32.xlu0 %v278
    %v280 = vpop.xlane.xlu0 %279
    %v281 = vsel %vm277, %v270, -inf
    %282 = vmax.xlane.f32.xlu0 %v281
    %v283 = vpop.xlane.xlu0 %282
    %v284 = vsel %vm277, %v271, -inf
    %285 = vmax.xlane.f32.xlu0 %v284
    %v286 = vpop.xlane.xlu0 %285
    %v287 = vsel %vm277, %v272, -inf
    %288 = vmax.xlane.f32.xlu0 %v287
    %v289 = vpop.xlane.xlu0 %288
    %v290 = vsel %vm277, %v273, -inf
    %291 = vmax.xlane.f32.xlu0 %v290
    %v292 = vpop.xlane.xlu0 %291
    %v293 = vsel %vm277, %v274, -inf
    %294 = vmax.xlane.f32.xlu0 %v293
    %v295 = vpop.xlane.xlu0 %294
    %v296 = vsel %vm277, %v275, -inf
    %297 = vmax.xlane.f32.xlu0 %v296
    %v298 = vpop.xlane.xlu0 %297
    %v299 = vsel %vm277, %v276, -inf
    %300 = vmax.xlane.f32.xlu0 %v299
    %v301 = vpop.xlane.xlu0 %300
    %v302 = vsub.f32 %v269, %v280
    %v303 = vsub.f32 %v270, %v283
    %v304 = vsub.f32 %v271, %v286
    %v305 = vsub.f32 %v272, %v289
    %v306 = vsub.f32 %v273, %v292
    %v307 = vsub.f32 %v274, %v295
    %v308 = vsub.f32 %v275, %v298
    %v309 = vsub.f32 %v276, %v301
    %v310 = vmul.f32 %v302, 1.442695
    %v311 = vpow.pop %v310
    %v312 = vmul.f32 %v303, 1.442695
    %v313 = vpow.pop %v312
    %v314 = vmul.f32 %v304, 1.442695
    %v315 = vpow.pop %v314
    %v316 = vmul.f32 %v305, 1.442695
    %v317 = vpow.pop %v316
    %v318 = vmul.f32 %v306, 1.442695
    %v319 = vpow.pop %v318
    %v320 = vmul.f32 %v307, 1.442695
    %v321 = vpow.pop %v320
    %v322 = vmul.f32 %v308, 1.442695
    %v323 = vpow.pop %v322
    %v324 = vmul.f32 %v309, 1.442695
    %v325 = vpow.pop %v324
    %v326 = vsel %vm277, %v311, 0.0
    %327 = vadd.xlane.f32.xlu0 %v326
    %v328 = vpop.xlane.xlu0 %327
    %v329 = vsel %vm277, %v313, 0.0
    %330 = vadd.xlane.f32.xlu0 %v329
    %v331 = vpop.xlane.xlu0 %330
    %v332 = vsel %vm277, %v315, 0.0
    %333 = vadd.xlane.f32.xlu0 %v332
    %v334 = vpop.xlane.xlu0 %333
    %v335 = vsel %vm277, %v317, 0.0
    %336 = vadd.xlane.f32.xlu0 %v335
    %v337 = vpop.xlane.xlu0 %336
    %v338 = vsel %vm277, %v319, 0.0
    %339 = vadd.xlane.f32.xlu0 %v338
    %v340 = vpop.xlane.xlu0 %339
    %v341 = vsel %vm277, %v321, 0.0
    %342 = vadd.xlane.f32.xlu0 %v341
    %v343 = vpop.xlane.xlu0 %342
    %v344 = vsel %vm277, %v323, 0.0
    %345 = vadd.xlane.f32.xlu0 %v344
    %v346 = vpop.xlane.xlu0 %345
    %v347 = vsel %vm277, %v325, 0.0
    %348 = vadd.xlane.f32.xlu0 %v347
    %v349 = vpop.xlane.xlu0 %348
    %v350 = vrcp.pop %v328
    %v351 = vrcp.pop %v331
    %v352 = vrcp.pop %v334
    %v353 = vrcp.pop %v337
    %v354 = vrcp.pop %v340
    %v355 = vrcp.pop %v343
    %v356 = vrcp.pop %v346
    %v357 = vrcp.pop %v349
    %v358 = vmul.f32 %v311, %v350
    %v359 = vmul.f32 %v313, %v351
    %v360 = vmul.f32 %v315, %v352
    %v361 = vmul.f32 %v317, %v353
    %v362 = vmul.f32 %v319, %v354
    %v363 = vmul.f32 %v321, %v355
    %v364 = vmul.f32 %v323, %v356
    %v365 = vmul.f32 %v325, %v357
    %v366 = vpack.c.bf16 %v359, %v358
    %v367 = vpack.c.bf16 %v361, %v360
    %v368 = vpack.c.bf16 %v363, %v362
    %v369 = vpack.c.bf16 %v365, %v364
    %370 = vrot.lane.b32.xlu0 %v177, 64
    %v371 = vpop.permute.xlu0 %370
    %v374 = vsel %vm277, %v366, 0
    %v377 = vsel %vm277, %v367, 0
    %v380 = vsel %vm277, %v368, 0
    %v383 = vsel %vm277, %v369, 0
    %385 = vmatprep.subr.bf16.mxu0 0
    %386 = vmatpush1.bf16.msra.mxu0 %v371
    %387 = vmatprep.subr.bf16.mxu0 0
    %388 = vmatpush1.bf16.msra.mxu0 0
    %389 = vmatprep.subr.bf16.mxu0 0
    %390 = vmatpush1.bf16.msra.mxu0 0
    %391 = vmatprep.subr.bf16.mxu0 0
    %392 = vmatpush1.bf16.msra.mxu0 0
    %393 = vmatprep.subr.bf16.mxu0 0
    %394 = vmatpush1.bf16.msra.mxu0 0
    %395 = vmatprep.subr.bf16.mxu0 0
    %396 = vmatpush1.bf16.msra.mxu0 0
    %397 = vmatprep.subr.bf16.mxu0 0
    %398 = vmatpush1.bf16.msra.mxu0 0
    %399 = vmatprep.subr.bf16.mxu0 0
    %400 = vmatpush1.bf16.msra.mxu0 0
    %401 = vmatprep.subr.bf16.mxu0 0
    %402 = vmatpush1.bf16.msra.mxu0 0
    %403 = vmatprep.subr.bf16.mxu0 0
    %404 = vmatpush1.bf16.msra.mxu0 0
    %405 = vmatprep.subr.bf16.mxu0 0
    %406 = vmatpush1.bf16.msra.mxu0 0
    %407 = vmatprep.subr.bf16.mxu0 0
    %408 = vmatpush1.bf16.msra.mxu0 0
    %409 = vmatprep.subr.bf16.mxu0 0
    %410 = vmatpush1.bf16.msra.mxu0 0
    %411 = vmatprep.subr.bf16.mxu0 0
    %412 = vmatpush1.bf16.msra.mxu0 0
    %413 = vmatprep.subr.bf16.mxu0 0
    %414 = vmatpush1.bf16.msra.mxu0 0
    %415 = vmatprep.subr.bf16.mxu0 0
    %416 = vmatpush1.bf16.msra.mxu0 0
    %417 = vmatprep.mubr.bf16.mxu0 0
    %418 = vmatmul.mubr.bf16.gmra.mrb[0].mxu0 %v374
    %v419 = vpop.f32.mrb[0].mxu0
    %v420 = vadd.f32 0.0, %v419
    %v421 = vpop.f32.mrb[0].mxu0
    %v422 = vpop.f32.mrb[0].mxu0
    %v423 = vadd.f32 0.0, %v422
    %v424 = vpop.f32.mrb[0].mxu0
    %425 = vmatprep.mubr.bf16.mxu0 0
    %426 = vmatmul.mubr.bf16.gmra.mrb[0].mxu0 %v377
    %v427 = vpop.f32.mrb[0].mxu0
    %v428 = vadd.f32 0.0, %v427
    %v429 = vpop.f32.mrb[0].mxu0
    %v430 = vpop.f32.mrb[0].mxu0
    %v431 = vadd.f32 0.0, %v430
    %v432 = vpop.f32.mrb[0].mxu0
    %433 = vmatprep.mubr.bf16.mxu0 0
    %434 = vmatmul.mubr.bf16.gmra.mrb[0].mxu0 %v380
    %v435 = vpop.f32.mrb[0].mxu0
    %v436 = vadd.f32 0.0, %v435
    %v437 = vpop.f32.mrb[0].mxu0
    %v438 = vpop.f32.mrb[0].mxu0
    %v439 = vadd.f32 0.0, %v438
    %v440 = vpop.f32.mrb[0].mxu0
    %441 = vmatprep.mubr.bf16.mxu0 0
    %442 = vmatmul.mubr.bf16.gmra.mrb[0].mxu0 %v383
    %v443 = vpop.f32.mrb[0].mxu0
    %v444 = vadd.f32 0.0, %v443
    %v445 = vpop.f32.mrb[0].mxu0
    %v446 = vpop.f32.mrb[0].mxu0
    %v447 = vadd.f32 0.0, %v446
    %v448 = vpop.f32.mrb[0].mxu0
    %449 = vdwg.mxu0
    %v450 = vmul.f32 %v420, %v75
    %v451 = vmul.f32 %v423, %v76
    %v452 = vmul.f32 %v428, %v77
    %v453 = vmul.f32 %v431, %v78
    %v454 = vmul.f32 %v436, %v79
    %v455 = vmul.f32 %v439, %v80
    %v456 = vmul.f32 %v444, %v81
    %v457 = vmul.f32 %v447, %v82
    %v458 = vadd.f32 %v450, %v452
    %v459 = vadd.f32 %v451, %v453
    %v460 = vadd.f32 %v458, %v454
    %v461 = vadd.f32 %v459, %v455
    %v462 = vadd.f32 %v460, %v456
    %v463 = vadd.f32 %v461, %v457
    %v464 = vpack.c.bf16 %v463, %v462
    %v465 = vlaneseq
    %v466 = vshrl.u32 %v465, 7
    %v467 = vsub.s32 0, %v466
    %v468 = vrot.slane %v60, %v467
    %v473 = vunpack.c.l.b16 %v87
    %v474 = vunpack.c.l.b16 %v88
    %v475 = vunpack.c.l.b16 %v89
    %v476 = vunpack.c.l.b16 %v90
    %v477 = vpack.c.b16 %v474, %v473
    %v478 = vpack.c.b16 %v476, %v475
    %v482 = vsel %vm120, %v464, 0
    %484 = vmatprep.subr.bf16.mxu0 0
    %485 = vmatpush1.bf16.msra.mxu0 %v477
    %486 = vmatprep.subr.bf16.mxu0 0
    %487 = vmatpush1.bf16.msra.mxu0 %v478
    %488 = vmatprep.subr.bf16.mxu0 0
    %489 = vmatpush1.bf16.msra.mxu0 0
    %490 = vmatprep.subr.bf16.mxu0 0
    %491 = vmatpush1.bf16.msra.mxu0 0
    %492 = vmatprep.subr.bf16.mxu0 0
    %493 = vmatpush1.bf16.msra.mxu0 0
    %494 = vmatprep.subr.bf16.mxu0 0
    %495 = vmatpush1.bf16.msra.mxu0 0
    %496 = vmatprep.subr.bf16.mxu0 0
    %497 = vmatpush1.bf16.msra.mxu0 0
    %498 = vmatprep.subr.bf16.mxu0 0
    %499 = vmatpush1.bf16.msra.mxu0 0
    %500 = vmatprep.subr.bf16.mxu0 0
    %501 = vmatpush1.bf16.msra.mxu0 0
    %502 = vmatprep.subr.bf16.mxu0 0
    %503 = vmatpush1.bf16.msra.mxu0 0
    %504 = vmatprep.subr.bf16.mxu0 0
    %505 = vmatpush1.bf16.msra.mxu0 0
    %506 = vmatprep.subr.bf16.mxu0 0
    %507 = vmatpush1.bf16.msra.mxu0 0
    %508 = vmatprep.subr.bf16.mxu0 0
    %509 = vmatpush1.bf16.msra.mxu0 0
    %510 = vmatprep.subr.bf16.mxu0 0
    %511 = vmatpush1.bf16.msra.mxu0 0
    %512 = vmatprep.subr.bf16.mxu0 0
    %513 = vmatpush1.bf16.msra.mxu0 0
    %514 = vmatprep.subr.bf16.mxu0 0
    %515 = vmatpush1.bf16.msra.mxu0 0
    %516 = vmatprep.mubr.bf16.mxu0 0
    %517 = vmatmul.mubr.bf16.gmra.mrb[0].mxu0 %v482
    %v518 = vpop.f32.mrb[0].mxu0
    %v519 = vadd.f32 %v468, %v518
    %v520 = vpop.f32.mrb[0].mxu0
    %v521 = vpop.f32.mrb[0].mxu0
    %v522 = vadd.f32 %v468, %v521
    %v523 = vpop.f32.mrb[0].mxu0
    %524 = vdwg.mxu0
    %v525 = vadd.f32 %v57, %v519
    %v526 = vadd.f32 %v58, %v522
    %v527 = vsel %vm120, %v525, 0.0
    %528 = vadd.xlane.f32.xlu0 %v527
    %v529 = vpop.xlane.xlu0 %528
    %v530 = vsel %vm120, %v526, 0.0
    %531 = vadd.xlane.f32.xlu0 %v530
    %v532 = vpop.xlane.xlu0 %531
    %v533 = vrcp.pop 32.0
    %v534 = vmul.f32 %v529, %v533
    %v535 = vmul.f32 %v532, %v533
    %v536 = vsub.f32 %v525, %v534
    %v537 = vsub.f32 %v526, %v535
    %v538 = vmul.f32 %v536, %v536
    %v539 = vmul.f32 %v537, %v537
    %v540 = vsel %vm120, %v538, 0.0
    %541 = vadd.xlane.f32.xlu0 %v540
    %v542 = vpop.xlane.xlu0 %541
    %v543 = vsel %vm120, %v539, 0.0
    %544 = vadd.xlane.f32.xlu0 %v543
    %v545 = vpop.xlane.xlu0 %544
    %v546 = vmul.f32 %v542, %v533
    %v547 = vmul.f32 %v545, %v533
    %v548 = vadd.f32 %v546, 1e-05
    %v549 = vadd.f32 %v547, 1e-05
    %v550 = vrsqrt.pop %v548
    %v551 = vrsqrt.pop %v549
    %v552 = vmul.f32 %v536, %v550
    %v553 = vmul.f32 %v537, %v551
    %v554 = vlaneseq
    %v555 = vshrl.u32 %v554, 7
    %v556 = vsub.s32 0, %v555
    %v557 = vrot.slane %v63, %v556
    %v558 = vmul.f32 %v552, %v557
    %v559 = vmul.f32 %v553, %v557
    %v560 = vlaneseq
    %v561 = vshrl.u32 %v560, 7
    %v562 = vsub.s32 0, %v561
    %v563 = vrot.slane %v64, %v562
    %v564 = vadd.f32 %v558, %v563
    %v565 = vadd.f32 %v559, %v563
    %v566 = vpack.c.bf16 %v565, %v564
    %v567 = vlaneseq
    %v568 = vshrl.u32 %v567, 7
    %v569 = vsub.s32 0, %v568
    %v570 = vrot.slane %v61, %v569
    %v575 = vunpack.c.l.b16 %v91
    %v576 = vunpack.c.l.b16 %v92
    %v577 = vunpack.c.l.b16 %v93
    %v578 = vunpack.c.l.b16 %v94
    %v579 = vpack.c.b16 %v576, %v575
    %v580 = vpack.c.b16 %v578, %v577
    %v584 = vsel %vm120, %v566, 0
    %586 = vmatprep.subr.bf16.mxu0 0
    %587 = vmatpush1.bf16.msra.mxu0 %v579
    %588 = vmatprep.subr.bf16.mxu0 0
    %589 = vmatpush1.bf16.msra.mxu0 %v580
    %590 = vmatprep.subr.bf16.mxu0 0
    %591 = vmatpush1.bf16.msra.mxu0 0
    %592 = vmatprep.subr.bf16.mxu0 0
    %593 = vmatpush1.bf16.msra.mxu0 0
    %594 = vmatprep.subr.bf16.mxu0 0
    %595 = vmatpush1.bf16.msra.mxu0 0
    %596 = vmatprep.subr.bf16.mxu0 0
    %597 = vmatpush1.bf16.msra.mxu0 0
    %598 = vmatprep.subr.bf16.mxu0 0
    %599 = vmatpush1.bf16.msra.mxu0 0
    %600 = vmatprep.subr.bf16.mxu0 0
    %601 = vmatpush1.bf16.msra.mxu0 0
    %602 = vmatprep.subr.bf16.mxu0 0
    %603 = vmatpush1.bf16.msra.mxu0 0
    %604 = vmatprep.subr.bf16.mxu0 0
    %605 = vmatpush1.bf16.msra.mxu0 0
    %606 = vmatprep.subr.bf16.mxu0 0
    %607 = vmatpush1.bf16.msra.mxu0 0
    %608 = vmatprep.subr.bf16.mxu0 0
    %609 = vmatpush1.bf16.msra.mxu0 0
    %610 = vmatprep.subr.bf16.mxu0 0
    %611 = vmatpush1.bf16.msra.mxu0 0
    %612 = vmatprep.subr.bf16.mxu0 0
    %613 = vmatpush1.bf16.msra.mxu0 0
    %614 = vmatprep.subr.bf16.mxu0 0
    %615 = vmatpush1.bf16.msra.mxu0 0
    %616 = vmatprep.subr.bf16.mxu0 0
    %617 = vmatpush1.bf16.msra.mxu0 0
    %618 = vmatprep.mubr.bf16.mxu0 0
    %619 = vmatmul.mubr.bf16.gmra.mrb[0].mxu0 %v584
    %v620 = vpop.f32.mrb[0].mxu0
    %v621 = vadd.f32 %v570, %v620
    %v622 = vpop.f32.mrb[0].mxu0
    %v623 = vpop.f32.mrb[0].mxu0
    %v624 = vadd.f32 %v570, %v623
    %v625 = vpop.f32.mrb[0].mxu0
    %626 = vdwg.mxu0
    %v627 = vmax.f32 %v621, 0.0
    %v628 = vmax.f32 %v624, 0.0
    %v629 = vpack.c.bf16 %v628, %v627
    %v630 = vlaneseq
    %v631 = vshrl.u32 %v630, 7
    %v632 = vsub.s32 0, %v631
    %v633 = vrot.slane %v62, %v632
    %v642 = vunpack.c.l.b16 %v95
    %v643 = vunpack.c.l.b16 %v96
    %v644 = vunpack.c.l.b16 %v97
    %v645 = vunpack.c.l.b16 %v98
    %v646 = vunpack.c.l.b16 %v99
    %v647 = vunpack.c.l.b16 %v100
    %v648 = vunpack.c.l.b16 %v101
    %v649 = vunpack.c.l.b16 %v102
    %v650 = vpack.c.b16 %v643, %v642
    %v651 = vpack.c.b16 %v645, %v644
    %v652 = vpack.c.b16 %v647, %v646
    %v653 = vpack.c.b16 %v649, %v648
    %vm658 = vcmask 523264
    %v660 = vsel %vm658, %v629, 0
    %662 = vmatprep.subr.bf16.mxu0 0
    %663 = vmatpush1.bf16.msra.mxu0 %v650
    %664 = vmatprep.subr.bf16.mxu0 0
    %665 = vmatpush1.bf16.msra.mxu0 %v651
    %666 = vmatprep.subr.bf16.mxu0 0
    %667 = vmatpush1.bf16.msra.mxu0 %v652
    %668 = vmatprep.subr.bf16.mxu0 0
    %669 = vmatpush1.bf16.msra.mxu0 %v653
    %670 = vmatprep.subr.bf16.mxu0 0
    %671 = vmatpush1.bf16.msra.mxu0 0
    %672 = vmatprep.subr.bf16.mxu0 0
    %673 = vmatpush1.bf16.msra.mxu0 0
    %674 = vmatprep.subr.bf16.mxu0 0
    %675 = vmatpush1.bf16.msra.mxu0 0
    %676 = vmatprep.subr.bf16.mxu0 0
    %677 = vmatpush1.bf16.msra.mxu0 0
    %678 = vmatprep.subr.bf16.mxu0 0
    %679 = vmatpush1.bf16.msra.mxu0 0
    %680 = vmatprep.subr.bf16.mxu0 0
    %681 = vmatpush1.bf16.msra.mxu0 0
    %682 = vmatprep.subr.bf16.mxu0 0
    %683 = vmatpush1.bf16.msra.mxu0 0
    %684 = vmatprep.subr.bf16.mxu0 0
    %685 = vmatpush1.bf16.msra.mxu0 0
    %686 = vmatprep.subr.bf16.mxu0 0
    %687 = vmatpush1.bf16.msra.mxu0 0
    %688 = vmatprep.subr.bf16.mxu0 0
    %689 = vmatpush1.bf16.msra.mxu0 0
    %690 = vmatprep.subr.bf16.mxu0 0
    %691 = vmatpush1.bf16.msra.mxu0 0
    %692 = vmatprep.subr.bf16.mxu0 0
    %693 = vmatpush1.bf16.msra.mxu0 0
    %694 = vmatprep.mubr.bf16.mxu0 0
    %695 = vmatmul.mubr.bf16.gmra.mrb[0].mxu0 %v660
    %v696 = vpop.f32.mrb[0].mxu0
    %v697 = vadd.f32 %v633, %v696
    %v698 = vpop.f32.mrb[0].mxu0
    %v699 = vpop.f32.mrb[0].mxu0
    %v700 = vadd.f32 %v633, %v699
    %v701 = vpop.f32.mrb[0].mxu0
    %702 = vdwg.mxu0
    %v703 = vadd.f32 %v564, %v697
    %v704 = vadd.f32 %v565, %v700
    %v705 = vsel %vm120, %v703, 0.0
    %706 = vadd.xlane.f32.xlu0 %v705
    %v707 = vpop.xlane.xlu0 %706
    %v708 = vsel %vm120, %v704, 0.0
    %709 = vadd.xlane.f32.xlu0 %v708
    %v710 = vpop.xlane.xlu0 %709
    %v711 = vmul.f32 %v707, %v533
    %v712 = vmul.f32 %v710, %v533
    %v713 = vsub.f32 %v703, %v711
    %v714 = vsub.f32 %v704, %v712
    %v715 = vmul.f32 %v713, %v713
    %v716 = vmul.f32 %v714, %v714
    %v717 = vsel %vm120, %v715, 0.0
    %718 = vadd.xlane.f32.xlu0 %v717
    %v719 = vpop.xlane.xlu0 %718
    %v720 = vsel %vm120, %v716, 0.0
    %721 = vadd.xlane.f32.xlu0 %v720
    %v722 = vpop.xlane.xlu0 %721
    %v723 = vmul.f32 %v719, %v533
    %v724 = vmul.f32 %v722, %v533
    %v725 = vadd.f32 %v723, 1e-05
    %v726 = vadd.f32 %v724, 1e-05
    %v727 = vrsqrt.pop %v725
    %v728 = vrsqrt.pop %v726
    %v729 = vmul.f32 %v713, %v727
    %v730 = vmul.f32 %v714, %v728
    %v731 = vlaneseq
    %v732 = vshrl.u32 %v731, 7
    %v733 = vsub.s32 0, %v732
    %v734 = vrot.slane %v65, %v733
    %v735 = vmul.f32 %v729, %v734
    %v736 = vmul.f32 %v730, %v734
    %v737 = vlaneseq
    %v738 = vshrl.u32 %v737, 7
    %v739 = vsub.s32 0, %v738
    %v740 = vrot.slane %v66, %v739
    %v741 = vadd.f32 %v735, %v740
    %v742 = vadd.f32 %v736, %v740
    %743 = vst.msk [vmem:[#allocation8] sm:$0xff] %vm120, %v741
    %744 = vst.msk [vmem:[#allocation8 + $0x8] sm:$0xff] %vm120, %v742
    // Predicated region
    $region26: #{tpu_custom_call.1} parent=1 // pred_check
      _
    $region27: #{tpu_custom_call.1} parent=1 // pred_check_branch
      %746 = sbr.rel (0) target = $region29
    $region28: #{tpu_custom_call.1} parent=1 // pred_region
      %s748 = ssub.s32 256, 256
      %749 = vsyncadd [#allocation4], %s748
      %s750 = sshll.u32 [#allocation8], 4
      %s751 = int_to_ptr.vmem [resolvable:$true] %s750
      %756 = dma.vmem_to_hbm [thread:$0]  %s751, 256, %s3, [#allocation4], 128, 128, 8
    $region29: #{tpu_custom_call.1} parent=1 // pred_fallthru
      _
    // Predicated region
    $region30: #{tpu_custom_call.1} parent=1 // pred_check
      _
    $region31: #{tpu_custom_call.1} parent=1 // pred_check_branch
      %758 = sbr.rel (0) target = $region33
    $region32: #{tpu_custom_call.1} parent=1 // pred_region
      %759 = dma.done [#allocation4], 256
    $region33: #{tpu_custom_call.1} parent=1 // pred_fallthru
      _
    %760 = vsyncpa [#allocation3], 1
    %761 = vsyncpa [#allocation6], 1
    %762 = vsyncpa [#allocation4], 1

</llo_original>
